<compile_context>
chip_gen: v7x
topology: tpu7x:2x2x1
jax: 0.10.0
libtpu: 0.0.40
codegen_flags: <defaults>
</compile_context>

<pallas_src>
import math
import functools

import jax
import jax.numpy as jnp
from jax.experimental import pallas as pl
from jax.experimental.pallas import tpu as pltpu


# ---------------------------------------------------------------------------
# helpers
# ---------------------------------------------------------------------------

def _round_up(x, m):
    return (x + m - 1) // m * m


def _pad2d(a, rows, cols):
    r, c = a.shape
    if r == rows and c == cols:
        return a
    return jnp.pad(a, ((0, rows - r), (0, cols - c)))


def _pick_tile(n, max_tile, mult):
    """Tile size (multiple of `mult`, <= max_tile) minimizing total padding of n."""
    units = -(-n // mult)                       # ceil(n / mult)
    max_units = max(1, max_tile // mult)
    start = -(-units // max_units)              # fewest blocks honoring max_tile
    best_key, best_tile = None, mult
    for nblk in range(start, units + 1):
        t_units = -(-units // nblk)
        pad_units = t_units * nblk - units
        key = (pad_units, nblk)                 # least padding, then biggest tile
        if best_key is None or key < best_key:
            best_key, best_tile = key, t_units * mult
        if pad_units == 0:
            break
    return best_tile


@functools.lru_cache(maxsize=1)
def _tpu_vmem_capacity():
    try:
        cap = getattr(pltpu.get_tpu_info(), "vmem_capacity_bytes", None)
        if cap:
            return int(cap)
    except Exception:
        pass
    return 64 << 20        # conservative fallback: v7x per-TC physical VMEM


def _vmem_budget():
    # ~0.7x physical: ~90 MiB on v5e/v6e (128 MiB), ~44 MiB on v7x (64 MiB).
    return int(0.7 * _tpu_vmem_capacity())


def _vmem_limit(est_bytes):
    # Margin for compiler-internal scratch, clamped under the per-generation budget.
    return int(min(_vmem_budget(), max(est_bytes + (4 << 20), 16 << 20)))


# ---------------------------------------------------------------------------
# fused kernel:  out = adj @ (x @ W) + bias
#   grid = (row tiles [parallel], N-reduction tiles [arbitrary])
# ---------------------------------------------------------------------------

def _fused_gcn_kernel(adj_ref, x_ref, w_ref, b_ref, o_ref):
    k = pl.program_id(1)

    @pl.when(k == 0)
    def _():
        o_ref[...] = jnp.zeros_like(o_ref)

    # k-slice of support = x[k_block, :] @ W, computed on the fly (never hits
    # HBM); bf16 MXU inputs, f32 accumulation.
    s_k = jnp.dot(x_ref[...], w_ref[...], preferred_element_type=jnp.float32)
    o_ref[...] += jnp.dot(adj_ref[...], s_k.astype(jnp.bfloat16),
                          preferred_element_type=jnp.float32)

    @pl.when(k == pl.num_programs(1) - 1)
    def _():
        o_ref[...] += b_ref[...]            # (1, Fo) broadcast over rows


def _fused_plan(M, N, F_in, F_out):
    """Static tiling plan + VMEM estimate for the fused path."""
    Fi = _round_up(F_in, 128)
    Fo = _round_up(F_out, 128)
    tm = _pick_tile(M, max_tile=512, mult=16)      # 16: bf16 sublane packing
    tk = _pick_tile(N, max_tile=512, mult=128)
    bf, f4 = 2, 4
    est = (2 * tm * tk * bf          # adj tile, double-buffered (bf16)
           + 2 * tk * Fi * bf        # x tile, double-buffered (bf16)
           + 2 * Fi * Fo * bf        # resident weight (counted x2, conservative)
           + 2 * Fo * f4             # bias row
           + 2 * tm * Fo * f4        # resident f32 output block (x2, conservative)
           + tk * Fo * f4            # on-the-fly s_k intermediate
           + tm * tk * f4)           # compiler scratch / relayout margin
    return tm, tk, Fi, Fo, est


def _gcn_fused(x, adj, weight, bias, *, tm, tk, Fi, Fo, est):
    M, N = adj.shape
    F_in = x.shape[1]
    F_out = weight.shape[1]

    Mp = _round_up(M, tm)
    Np = _round_up(N, tk)

    if bias is None:
        bias = jnp.zeros((F_out,), jnp.float32)

    adj_p = _pad2d(adj, Mp, Np).astype(jnp.bfloat16)
    x_p = _pad2d(x, Np, Fi).astype(jnp.bfloat16)
    w_p = _pad2d(weight, Fi, Fo).astype(jnp.bfloat16)
    b_p = _pad2d(bias.reshape(1, F_out).astype(jnp.float32), 1, Fo)

    grid = (Mp // tm, Np // tk)

    out = pl.pallas_call(
        _fused_gcn_kernel,
        out_shape=jax.ShapeDtypeStruct((Mp, Fo), jnp.float32),
        grid_spec=pltpu.PrefetchScalarGridSpec(
            num_scalar_prefetch=0,
            grid=grid,
            in_specs=[
                pl.BlockSpec((tm, tk), lambda i, k: (i, k)),   # adj tile
                pl.BlockSpec((tk, Fi), lambda i, k: (k, 0)),   # x rows for this k
                pl.BlockSpec((Fi, Fo), lambda i, k: (0, 0)),   # full weight (resident)
                pl.BlockSpec((1, Fo), lambda i, k: (0, 0)),    # bias row
            ],
            out_specs=pl.BlockSpec((tm, Fo), lambda i, k: (i, 0)),  # resident acc
        ),
        compiler_params=pltpu.CompilerParams(
            dimension_semantics=("parallel", "arbitrary"),
            vmem_limit_bytes=_vmem_limit(est)),
    )(adj_p, x_p, w_p, b_p)

    return out[:M, :F_out]


# ---------------------------------------------------------------------------
# tiled fallback: generic matmul (+ optional fused bias), accumulate in o_ref
# ---------------------------------------------------------------------------

def _matmul_kernel(a_ref, b_ref, o_ref):
    @pl.when(pl.program_id(2) == 0)
    def _():
        o_ref[...] = jnp.zeros_like(o_ref)
    o_ref[...] += jnp.dot(a_ref[...], b_ref[...],
                          preferred_element_type=jnp.float32)


def _matmul_bias_kernel(a_ref, b_ref, bias_ref, o_ref):
    @pl.when(pl.program_id(2) == 0)
    def _():
        o_ref[...] = jnp.zeros_like(o_ref)
    o_ref[...] += jnp.dot(a_ref[...], b_ref[...],
                          preferred_element_type=jnp.float32)

    @pl.when(pl.program_id(2) == pl.num_programs(2) - 1)
    def _():
        o_ref[...] += bias_ref[...]


def _pallas_matmul(a, b, bias=None, *, tm_max=512, tn_max=512, tk_max=512):
    """o = a @ b (+ bias).  bf16 MXU inputs, f32 accumulation/output."""
    M, K = a.shape
    K2, N = b.shape
    assert K == K2

    tm = _pick_tile(M, max_tile=tm_max, mult=16)
    tn = _pick_tile(N, max_tile=tn_max, mult=128)
    tk = _pick_tile(K, max_tile=tk_max, mult=128)
    Mp, Kp, Np = _round_up(M, tm), _round_up(K, tk), _round_up(N, tn)

    a_p = _pad2d(a, Mp, Kp).astype(jnp.bfloat16)
    b_p = _pad2d(b, Kp, Np).astype(jnp.bfloat16)

    grid = (Mp // tm, Np // tn, Kp // tk)
    a_spec = pl.BlockSpec((tm, tk), lambda i, j, k: (i, k))
    b_spec = pl.BlockSpec((tk, tn), lambda i, j, k: (k, j))
    o_spec = pl.BlockSpec((tm, tn), lambda i, j, k: (i, j))

    est = (2 * tm * tk * 2 + 2 * tk * tn * 2   # bf16 inputs, double-buffered
           + 2 * tm * tn * 4                   # f32 output block
           + 2 * tn * 4                        # bias row
           + tm * tn * 4)                      # margin
    cparams = pltpu.CompilerParams(
        dimension_semantics=("parallel", "parallel", "arbitrary"),
        vmem_limit_bytes=_vmem_limit(est))

    if bias is None:
        out = pl.pallas_call(
            _matmul_kernel,
            out_shape=jax.ShapeDtypeStruct((Mp, Np), jnp.float32),
            grid_spec=pltpu.PrefetchScalarGridSpec(
                num_scalar_prefetch=0, grid=grid,
                in_specs=[a_spec, b_spec], out_specs=o_spec),
            compiler_params=cparams,
        )(a_p, b_p)
    else:
        bias_p = _pad2d(bias.reshape(1, N).astype(jnp.float32), 1, Np)
        bias_spec = pl.BlockSpec((1, tn), lambda i, j, k: (0, j))
        out = pl.pallas_call(
            _matmul_bias_kernel,
            out_shape=jax.ShapeDtypeStruct((Mp, Np), jnp.float32),
            grid_spec=pltpu.PrefetchScalarGridSpec(
                num_scalar_prefetch=0, grid=grid,
                in_specs=[a_spec, b_spec, bias_spec], out_specs=o_spec),
            compiler_params=cparams,
        )(a_p, b_p, bias_p)

    return out[:M, :N]


# ---------------------------------------------------------------------------
# public forward
# ---------------------------------------------------------------------------

@functools.partial(jax.jit, static_argnames=("force_tiled",))
def graph_convolution(x, adj, weight, bias=None, force_tiled=False):
    """GraphConvolution.forward: adj @ (x @ weight) (+ bias), all in Pallas."""
    M, N = adj.shape
    Nx, F_in = x.shape
    F_out = weight.shape[1]
    assert N == Nx, "adj.shape[1] must equal x.shape[0]"
    assert weight.shape[0] == F_in, "weight.shape[0] must equal x.shape[1]"

    if not force_tiled:
        tm, tk, Fi, Fo, est = _fused_plan(M, N, F_in, F_out)
        if est <= _vmem_budget():
            return _gcn_fused(x, adj, weight, bias,
                              tm=tm, tk=tk, Fi=Fi, Fo=Fo, est=est)

    # Tiled fallback (weight too large to keep resident, or forced).
    # Contract adj against the narrower feature matrix (free algorithmic win);
    # the adj matmul uses tall row tiles with the full padded feature width so
    # the narrow B operand is not re-fetched per row tile.
    Fi_pad = _round_up(F_in, 128)
    Fo_pad = _round_up(F_out, 128)
    if F_out <= F_in:
        support = _pallas_matmul(x, weight)                       # (N, F_out)
        return _pallas_matmul(adj, support, bias=bias,
                              tm_max=512,
                              tn_max=max(256, min(Fo_pad, 1024)))
    else:
        ax = _pallas_matmul(adj, x,
                            tm_max=512,
                            tn_max=max(256, min(Fi_pad, 1024)))   # (M, F_in)
        return _pallas_matmul(ax, weight, bias=bias)


def init_params(key, in_features, out_features):
    """Mirrors reset_parameter(): uniform(-stdv, stdv), stdv = 1/sqrt(out_features)."""
    stdv = 1.0 / math.sqrt(out_features)
    kw, kb = jax.random.split(key)
    weight = jax.random.uniform(kw, (in_features, out_features),
                                dtype=jnp.float32, minval=-stdv, maxval=stdv)
    bias = jax.random.uniform(kb, (out_features,),
                              dtype=jnp.float32, minval=-stdv, maxval=stdv)
    return weight, bias


if __name__ == "__main__":
    key = jax.random.PRNGKey(0)

    def make_case(k, n, f_in, f_out):
        k_x, k_adj, k_p = jax.random.split(k, 3)
        x = jax.random.normal(k_x, (n, f_in), dtype=jnp.float32)
        # Symmetric, row-normalized dense adjacency (what text-GCN feeds as sparse).
        a = jax.random.uniform(k_adj, (n, n), dtype=jnp.float32)
        a = (a > 0.9).astype(jnp.float32)
        a = a + a.T + jnp.eye(n, dtype=jnp.float32)
        adj = a / jnp.sum(a, axis=1, keepdims=True)
        weight, bias = init_params(k_p, f_in, f_out)
        return x, adj, weight, bias

    # (N nodes, F_in, F_out, force_tiled)
    cases = [
        (256, 128, 128, False),   # tile-aligned, fused single-kernel path
        (100, 48, 72, False),     # ragged shapes -> padding / tail handling
        (640, 64, 96, False),     # multi row-tile / multi k-step fused grid
        (192, 64, 160, True),     # tiled fallback path, F_out > F_in order swap
    ]
    keys = jax.random.split(key, len(cases))
    for kk, (n, fi, fo, force_tiled) in zip(keys, cases):
        x, adj, weight, bias = make_case(kk, n, fi, fo)
        out = graph_convolution(x, adj, weight, bias, force_tiled=force_tiled)
        out = jax.block_until_ready(out)
        ref = adj @ (x @ weight) + bias
        assert out.shape == (n, fo), out.shape
        # bf16 MXU inputs with f32 accumulation: tolerance reflects bf16
        # input rounding (documented deviation from pure-f32 torch semantics).
        assert jnp.allclose(out, ref, atol=3e-2, rtol=3e-2), \
            float(jnp.max(jnp.abs(out - ref)))

    print("KERNEL_OK")
</pallas_src>

<mosaic_0001>
module attributes {stable_mosaic.version = 11 : i64} {
  func.func @_fused_gcn_kernel(%arg0: i32, %arg1: i32, %arg2: memref<256x256xbf16, #tpu.memory_space<vmem>>, %arg3: memref<256x128xbf16, #tpu.memory_space<vmem>>, %arg4: memref<128x128xbf16, #tpu.memory_space<vmem>>, %arg5: memref<1x128xf32, #tpu.memory_space<vmem>>, %arg6: memref<256x128xf32, #tpu.memory_space<vmem>>) attributes {dimension_semantics = [#tpu.dimension_semantics<parallel>, #tpu.dimension_semantics<arbitrary>], iteration_bounds = array<i64: 1, 1>, scalar_prefetch = 0 : i64, scratch_operands = 0 : i64, tpu.core_type = #tpu.core_type<tc>, window_params = [{transform_indices = @transform_0, window_bounds = array<i64: 256, 256>}, {transform_indices = @transform_1, window_bounds = array<i64: 256, 128>}, {pipeline_mode = #tpu.pipeline_mode<synchronous>, transform_indices = @transform_2, window_bounds = array<i64: 128, 128>}, {pipeline_mode = #tpu.pipeline_mode<synchronous>, transform_indices = @transform_3, window_bounds = array<i64: 1, 128>}, {transform_indices = @transform_4, window_bounds = array<i64: 256, 128>}]} {
    %c0_i32 = arith.constant 0 : i32
    %0 = arith.cmpi eq, %arg1, %c0_i32 : i32
    %1 = arith.extui %0 : i1 to i32
    %c0_i32_0 = arith.constant 0 : i32
    %2 = arith.cmpi ne, %1, %c0_i32_0 : i32
    scf.if %2 {
      %cst_13 = arith.constant 0.000000e+00 : f32
      %15 = vector.broadcast %cst_13 : f32 to vector<256x128xf32>
      %c0_14 = arith.constant 0 : index
      %c0_15 = arith.constant 0 : index
      %16 = vector.load %arg6[%c0_14, %c0_15] : memref<256x128xf32, #tpu.memory_space<vmem>>, vector<256x128xf32>
      tpu.vector_store %arg6[%c0_14, %c0_15], %15 {strides = array<i32>} : memref<256x128xf32, #tpu.memory_space<vmem>>, vector<256x128xf32>,
    } else {
    }
    %c0 = arith.constant 0 : index
    %c0_1 = arith.constant 0 : index
    %3 = vector.load %arg3[%c0, %c0_1] : memref<256x128xbf16, #tpu.memory_space<vmem>>, vector<256x128xbf16>
    %c0_2 = arith.constant 0 : index
    %c0_3 = arith.constant 0 : index
    %4 = vector.load %arg4[%c0_2, %c0_3] : memref<128x128xbf16, #tpu.memory_space<vmem>>, vector<128x128xbf16>
    %cst = arith.constant dense<0.000000e+00> : vector<256x128xf32>
    %5 = tpu.matmul %3, %4, %cst {dimension_numbers = #tpu.dot_dimension_numbers<[1], [0], [0], [1], [0, 0, 1, 1], [], []>} : vector<256x128xbf16>, vector<128x128xbf16>, vector<256x128xf32> -> vector<256x128xf32>
    %c0_4 = arith.constant 0 : index
    %c0_5 = arith.constant 0 : index
    %6 = vector.load %arg6[%c0_4, %c0_5] : memref<256x128xf32, #tpu.memory_space<vmem>>, vector<256x128xf32>
    %c0_6 = arith.constant 0 : index
    %c0_7 = arith.constant 0 : index
    %7 = vector.load %arg2[%c0_6, %c0_7] : memref<256x256xbf16, #tpu.memory_space<vmem>>, vector<256x256xbf16>
    %8 = arith.truncf %5 : vector<256x128xf32> to vector<256x128xbf16>
    %cst_8 = arith.constant dense<0.000000e+00> : vector<256x128xf32>
    %9 = tpu.matmul %7, %8, %cst_8 {dimension_numbers = #tpu.dot_dimension_numbers<[1], [0], [0], [1], [0, 0, 1, 1], [], []>} : vector<256x256xbf16>, vector<256x128xbf16>, vector<256x128xf32> -> vector<256x128xf32>
    %10 = arith.addf %6, %9 : vector<256x128xf32>
    %c0_9 = arith.constant 0 : index
    %c0_10 = arith.constant 0 : index
    %11 = vector.load %arg6[%c0_9, %c0_10] : memref<256x128xf32, #tpu.memory_space<vmem>>, vector<256x128xf32>
    tpu.vector_store %arg6[%c0_9, %c0_10], %10 {strides = array<i32>} : memref<256x128xf32, #tpu.memory_space<vmem>>, vector<256x128xf32>,
    %c0_i32_11 = arith.constant 0 : i32
    %12 = arith.cmpi eq, %arg1, %c0_i32_11 : i32
    %13 = arith.extui %12 : i1 to i32
    %c0_i32_12 = arith.constant 0 : i32
    %14 = arith.cmpi ne, %13, %c0_i32_12 : i32
    scf.if %14 {
      %c0_13 = arith.constant 0 : index
      %c0_14 = arith.constant 0 : index
      %15 = vector.load %arg6[%c0_13, %c0_14] : memref<256x128xf32, #tpu.memory_space<vmem>>, vector<256x128xf32>
      %c0_15 = arith.constant 0 : index
      %c0_16 = arith.constant 0 : index
      %16 = vector.load %arg5[%c0_15, %c0_16] : memref<1x128xf32, #tpu.memory_space<vmem>>, vector<1x128xf32>
      %17 = vector.broadcast %16 : vector<1x128xf32> to vector<256x128xf32>
      %18 = arith.addf %15, %17 : vector<256x128xf32>
      %c0_17 = arith.constant 0 : index
      %c0_18 = arith.constant 0 : index
      %19 = vector.load %arg6[%c0_17, %c0_18] : memref<256x128xf32, #tpu.memory_space<vmem>>, vector<256x128xf32>
      tpu.vector_store %arg6[%c0_17, %c0_18], %18 {strides = array<i32>} : memref<256x128xf32, #tpu.memory_space<vmem>>, vector<256x128xf32>,
    } else {
    }
    return
  }
  func.func @transform_0(%arg0: i32, %arg1: i32) -> (i32, i32) {
    %c0_i32 = arith.constant 0 : i32
    return %arg0, %arg1 : i32, i32
  }
  func.func @transform_1(%arg0: i32, %arg1: i32) -> (i32, i32) {
    %c0_i32 = arith.constant 0 : i32
    %c0_i32_0 = arith.constant 0 : i32
    return %arg1, %c0_i32 : i32, i32
  }
  func.func @transform_2(%arg0: i32, %arg1: i32) -> (i32, i32) {
    %c0_i32 = arith.constant 0 : i32
    %c0_i32_0 = arith.constant 0 : i32
    %c0_i32_1 = arith.constant 0 : i32
    return %c0_i32, %c0_i32_0 : i32, i32
  }
  func.func @transform_3(%arg0: i32, %arg1: i32) -> (i32, i32) {
    %c0_i32 = arith.constant 0 : i32
    %c0_i32_0 = arith.constant 0 : i32
    %c0_i32_1 = arith.constant 0 : i32
    return %c0_i32, %c0_i32_0 : i32, i32
  }
  func.func @transform_4(%arg0: i32, %arg1: i32) -> (i32, i32) {
    %c0_i32 = arith.constant 0 : i32
    %c0_i32_0 = arith.constant 0 : i32
    return %arg0, %c0_i32 : i32, i32
  }
}

</mosaic_0001>

<llo_original>
// kernel: graph_convolution.1
$region0: #{graph_convolution.1}
  #allocation0 [shape = 'u32[]', space=smem, size = 0x4, offset = 0x4, fixed_abs, tag = 'smem constant byte address 0x4 - core index']
  #allocation1 [shape = 'u32[144,128]{1,0:T(1,128)}', space=vmem, size = 0x12000, scoped, tag = 'internal scratch']
  %s0 = inlined_call_operand.vmem [shape: bf16[256,256], index: 0, kind: input, shape index: {}]
  %s1 = inlined_call_operand.vmem [shape: bf16[256,128], index: 1, kind: input, shape index: {}]
  %s2 = inlined_call_operand.vmem [shape: bf16[128,128], index: 2, kind: input, shape index: {}]
  %s3 = inlined_call_operand.vmem [shape: f32[1,128], index: 3, kind: input, shape index: {}]
  %s4 = inlined_call_operand.hbm [shape: f32[256,128], index: 4, kind: output, shape index: {}]
  %s5 = sld [smem:[#allocation0]]
  $region34: #{graph_convolution.1} parent=0
    _
  %s7 = ssub.s32 1, %s5
  %s8 = scalar_select 0, %s7, %s5
  $region1: #{graph_convolution.1} parent=0
    #allocation2 [shape = 'u8[131072]{0}', space=vmem, size = 0x20000, scoped, tag = 'output window, operand 0, single buffered']
    #allocation3 [shape = 's32[1]{0}', space=sflag, size = 0x4, scoped, tag = 'scoped memory for graph_convolution.1']
    %9 = vsyncpa [#allocation3], 0
    // Predicated region
    $region2: #{graph_convolution.1} parent=1 // pred_check
      _
    $region3: #{graph_convolution.1} parent=1 // pred_check_branch
      %11 = sbr.rel (0) target = $region5
    $region4: #{graph_convolution.1} parent=1 // pred_region
      _
    $region5: #{graph_convolution.1} parent=1 // pred_fallthru
      _
    // Predicated region
    $region6: #{graph_convolution.1} parent=1 // pred_check
      _
    $region7: #{graph_convolution.1} parent=1 // pred_check_branch
      %13 = sbr.rel (0) target = $region9
    $region8: #{graph_convolution.1} parent=1 // pred_region
      _
    $region9: #{graph_convolution.1} parent=1 // pred_fallthru
      _
    // Predicated region
    $region10: #{graph_convolution.1} parent=1 // pred_check
      _
    $region11: #{graph_convolution.1} parent=1 // pred_check_branch
      %15 = sbr.rel (0) target = $region13
    $region12: #{graph_convolution.1} parent=1 // pred_region
      _
    $region13: #{graph_convolution.1} parent=1 // pred_fallthru
      _
    // Predicated region
    $region14: #{graph_convolution.1} parent=1 // pred_check
      _
    $region15: #{graph_convolution.1} parent=1 // pred_check_branch
      %17 = sbr.rel (0) target = $region17
    $region16: #{graph_convolution.1} parent=1 // pred_region
      _
    $region17: #{graph_convolution.1} parent=1 // pred_fallthru
      _
    %p19 = scmp.eq.s32.totalorder 0, 0
    // Predicated region
    $region18: #{graph_convolution.1} parent=1 // pred_check
      %p20 = pneg %p19
    $region19: #{graph_convolution.1} parent=1 // pred_check_branch
      %22 = sbr.rel (%p20) target = $region21
    $region20: #{graph_convolution.1} parent=1 // pred_region
      %23 = vst [vmem:[#allocation2] sm:$0xff] 0.0
      %24 = vst [vmem:[#allocation2 + $0x8] sm:$0xff] 0.0
      %25 = vst [vmem:[#allocation2 + $0x10] sm:$0xff] 0.0
      %26 = vst [vmem:[#allocation2 + $0x18] sm:$0xff] 0.0
      %27 = vst [vmem:[#allocation2 + $0x20] sm:$0xff] 0.0
      %28 = vst [vmem:[#allocation2 + $0x28] sm:$0xff] 0.0
      %29 = vst [vmem:[#allocation2 + $0x30] sm:$0xff] 0.0
      %30 = vst [vmem:[#allocation2 + $0x38] sm:$0xff] 0.0
      %31 = vst [vmem:[#allocation2 + $0x40] sm:$0xff] 0.0
      %32 = vst [vmem:[#allocation2 + $0x48] sm:$0xff] 0.0
      %33 = vst [vmem:[#allocation2 + $0x50] sm:$0xff] 0.0
      %34 = vst [vmem:[#allocation2 + $0x58] sm:$0xff] 0.0
      %35 = vst [vmem:[#allocation2 + $0x60] sm:$0xff] 0.0
      %36 = vst [vmem:[#allocation2 + $0x68] sm:$0xff] 0.0
      %37 = vst [vmem:[#allocation2 + $0x70] sm:$0xff] 0.0
      %38 = vst [vmem:[#allocation2 + $0x78] sm:$0xff] 0.0
      %39 = vst [vmem:[#allocation2 + $0x80] sm:$0xff] 0.0
      %40 = vst [vmem:[#allocation2 + $0x88] sm:$0xff] 0.0
      %41 = vst [vmem:[#allocation2 + $0x90] sm:$0xff] 0.0
      %42 = vst [vmem:[#allocation2 + $0x98] sm:$0xff] 0.0
      %43 = vst [vmem:[#allocation2 + $0xa0] sm:$0xff] 0.0
      %44 = vst [vmem:[#allocation2 + $0xa8] sm:$0xff] 0.0
      %45 = vst [vmem:[#allocation2 + $0xb0] sm:$0xff] 0.0
      %46 = vst [vmem:[#allocation2 + $0xb8] sm:$0xff] 0.0
      %47 = vst [vmem:[#allocation2 + $0xc0] sm:$0xff] 0.0
      %48 = vst [vmem:[#allocation2 + $0xc8] sm:$0xff] 0.0
      %49 = vst [vmem:[#allocation2 + $0xd0] sm:$0xff] 0.0
      %50 = vst [vmem:[#allocation2 + $0xd8] sm:$0xff] 0.0
      %51 = vst [vmem:[#allocation2 + $0xe0] sm:$0xff] 0.0
      %52 = vst [vmem:[#allocation2 + $0xe8] sm:$0xff] 0.0
      %53 = vst [vmem:[#allocation2 + $0xf0] sm:$0xff] 0.0
      %54 = vst [vmem:[#allocation2 + $0xf8] sm:$0xff] 0.0
    $region21: #{graph_convolution.1} parent=1 // pred_fallthru
      _
    %v55 = vld [vmem:[%s1] sm:$0xf]
    %v56 = vld [vmem:[%s1 + $0x4] sm:$0xf]
    %v57 = vld [vmem:[%s1 + $0x8] sm:$0xf]
    %v58 = vld [vmem:[%s1 + $0xc] sm:$0xf]
    %v59 = vld [vmem:[%s1 + $0x10] sm:$0xf]
    %v60 = vld [vmem:[%s1 + $0x14] sm:$0xf]
    %v61 = vld [vmem:[%s1 + $0x18] sm:$0xf]
    %v62 = vld [vmem:[%s1 + $0x1c] sm:$0xf]
    %v63 = vld [vmem:[%s1 + $0x20] sm:$0xf]
    %v64 = vld [vmem:[%s1 + $0x24] sm:$0xf]
    %v65 = vld [vmem:[%s1 + $0x28] sm:$0xf]
    %v66 = vld [vmem:[%s1 + $0x2c] sm:$0xf]
    %v67 = vld [vmem:[%s1 + $0x30] sm:$0xf]
    %v68 = vld [vmem:[%s1 + $0x34] sm:$0xf]
    %v69 = vld [vmem:[%s1 + $0x38] sm:$0xf]
    %v70 = vld [vmem:[%s1 + $0x3c] sm:$0xf]
    %v71 = vld [vmem:[%s1 + $0x40] sm:$0xf]
    %v72 = vld [vmem:[%s1 + $0x44] sm:$0xf]
    %v73 = vld [vmem:[%s1 + $0x48] sm:$0xf]
    %v74 = vld [vmem:[%s1 + $0x4c] sm:$0xf]
    %v75 = vld [vmem:[%s1 + $0x50] sm:$0xf]
    %v76 = vld [vmem:[%s1 + $0x54] sm:$0xf]
    %v77 = vld [vmem:[%s1 + $0x58] sm:$0xf]
    %v78 = vld [vmem:[%s1 + $0x5c] sm:$0xf]
    %v79 = vld [vmem:[%s1 + $0x60] sm:$0xf]
    %v80 = vld [vmem:[%s1 + $0x64] sm:$0xf]
    %v81 = vld [vmem:[%s1 + $0x68] sm:$0xf]
    %v82 = vld [vmem:[%s1 + $0x6c] sm:$0xf]
    %v83 = vld [vmem:[%s1 + $0x70] sm:$0xf]
    %v84 = vld [vmem:[%s1 + $0x74] sm:$0xf]
    %v85 = vld [vmem:[%s1 + $0x78] sm:$0xf]
    %v86 = vld [vmem:[%s1 + $0x7c] sm:$0xf]
    %v87 = vld [vmem:[%s2] sm:$0xf]
    %v88 = vld [vmem:[%s2 + $0x4] sm:$0xf]
    %v89 = vld [vmem:[%s2 + $0x8] sm:$0xf]
    %v90 = vld [vmem:[%s2 + $0xc] sm:$0xf]
    %v91 = vld [vmem:[%s2 + $0x10] sm:$0xf]
    %v92 = vld [vmem:[%s2 + $0x14] sm:$0xf]
    %v93 = vld [vmem:[%s2 + $0x18] sm:$0xf]
    %v94 = vld [vmem:[%s2 + $0x1c] sm:$0xf]
    %v95 = vld [vmem:[%s2 + $0x20] sm:$0xf]
    %v96 = vld [vmem:[%s2 + $0x24] sm:$0xf]
    %v97 = vld [vmem:[%s2 + $0x28] sm:$0xf]
    %v98 = vld [vmem:[%s2 + $0x2c] sm:$0xf]
    %v99 = vld [vmem:[%s2 + $0x30] sm:$0xf]
    %v100 = vld [vmem:[%s2 + $0x34] sm:$0xf]
    %v101 = vld [vmem:[%s2 + $0x38] sm:$0xf]
    %v102 = vld [vmem:[%s2 + $0x3c] sm:$0xf]
    %v135 = vunpack.c.l.b16 %v55
    %v136 = vunpack.c.l.b16 %v56
    %v137 = vunpack.c.l.b16 %v57
    %v138 = vunpack.c.l.b16 %v58
    %v139 = vunpack.c.l.b16 %v59
    %v140 = vunpack.c.l.b16 %v60
    %v141 = vunpack.c.l.b16 %v61
    %v142 = vunpack.c.l.b16 %v62
    %v143 = vunpack.c.l.b16 %v63
    %v144 = vunpack.c.l.b16 %v64
    %v145 = vunpack.c.l.b16 %v65
    %v146 = vunpack.c.l.b16 %v66
    %v147 = vunpack.c.l.b16 %v67
    %v148 = vunpack.c.l.b16 %v68
    %v149 = vunpack.c.l.b16 %v69
    %v150 = vunpack.c.l.b16 %v70
    %v151 = vunpack.c.l.b16 %v71
    %v152 = vunpack.c.l.b16 %v72
    %v153 = vunpack.c.l.b16 %v73
    %v154 = vunpack.c.l.b16 %v74
    %v155 = vunpack.c.l.b16 %v75
    %v156 = vunpack.c.l.b16 %v76
    %v157 = vunpack.c.l.b16 %v77
    %v158 = vunpack.c.l.b16 %v78
    %v159 = vunpack.c.l.b16 %v79
    %v160 = vunpack.c.l.b16 %v80
    %v161 = vunpack.c.l.b16 %v81
    %v162 = vunpack.c.l.b16 %v82
    %v163 = vunpack.c.l.b16 %v83
    %v164 = vunpack.c.l.b16 %v84
    %v165 = vunpack.c.l.b16 %v85
    %v166 = vunpack.c.l.b16 %v86
    %v167 = vpack.c.b16 %v136, %v135
    %v168 = vpack.c.b16 %v138, %v137
    %v169 = vpack.c.b16 %v140, %v139
    %v170 = vpack.c.b16 %v142, %v141
    %v171 = vpack.c.b16 %v144, %v143
    %v172 = vpack.c.b16 %v146, %v145
    %v173 = vpack.c.b16 %v148, %v147
    %v174 = vpack.c.b16 %v150, %v149
    %v175 = vpack.c.b16 %v152, %v151
    %v176 = vpack.c.b16 %v154, %v153
    %v177 = vpack.c.b16 %v156, %v155
    %v178 = vpack.c.b16 %v158, %v157
    %v179 = vpack.c.b16 %v160, %v159
    %v180 = vpack.c.b16 %v162, %v161
    %v181 = vpack.c.b16 %v164, %v163
    %v182 = vpack.c.b16 %v166, %v165
    %v215 = vunpack.c.l.b16 %v87
    %v216 = vunpack.c.l.b16 %v88
    %v217 = vunpack.c.l.b16 %v89
    %v218 = vunpack.c.l.b16 %v90
    %v219 = vunpack.c.l.b16 %v91
    %v220 = vunpack.c.l.b16 %v92
    %v221 = vunpack.c.l.b16 %v93
    %v222 = vunpack.c.l.b16 %v94
    %v223 = vunpack.c.l.b16 %v95
    %v224 = vunpack.c.l.b16 %v96
    %v225 = vunpack.c.l.b16 %v97
    %v226 = vunpack.c.l.b16 %v98
    %v227 = vunpack.c.l.b16 %v99
    %v228 = vunpack.c.l.b16 %v100
    %v229 = vunpack.c.l.b16 %v101
    %v230 = vunpack.c.l.b16 %v102
    %v231 = vpack.c.b16 %v216, %v215
    %v232 = vpack.c.b16 %v218, %v217
    %v233 = vpack.c.b16 %v220, %v219
    %v234 = vpack.c.b16 %v222, %v221
    %v235 = vpack.c.b16 %v224, %v223
    %v236 = vpack.c.b16 %v226, %v225
    %v237 = vpack.c.b16 %v228, %v227
    %v238 = vpack.c.b16 %v230, %v229
    %247 = vmatprep.subr.bf16.mxu0 0
    %248 = vmatpush1.bf16.msra.mxu0 %v231
    %249 = vmatprep.subr.bf16.mxu0 0
    %250 = vmatpush1.bf16.msra.mxu0 %v232
    %251 = vmatprep.subr.bf16.mxu0 0
    %252 = vmatpush1.bf16.msra.mxu0 %v233
    %253 = vmatprep.subr.bf16.mxu0 0
    %254 = vmatpush1.bf16.msra.mxu0 %v234
    %255 = vmatprep.subr.bf16.mxu0 0
    %256 = vmatpush1.bf16.msra.mxu0 %v235
    %257 = vmatprep.subr.bf16.mxu0 0
    %258 = vmatpush1.bf16.msra.mxu0 %v236
    %259 = vmatprep.subr.bf16.mxu0 0
    %260 = vmatpush1.bf16.msra.mxu0 %v237
    %261 = vmatprep.subr.bf16.mxu0 0
    %262 = vmatpush1.bf16.msra.mxu0 %v238
    %263 = vmatprep.subr.bf16.mxu0 0
    %264 = vmatpush1.bf16.msra.mxu0 0
    %265 = vmatprep.subr.bf16.mxu0 0
    %266 = vmatpush1.bf16.msra.mxu0 0
    %267 = vmatprep.subr.bf16.mxu0 0
    %268 = vmatpush1.bf16.msra.mxu0 0
    %269 = vmatprep.subr.bf16.mxu0 0
    %270 = vmatpush1.bf16.msra.mxu0 0
    %271 = vmatprep.subr.bf16.mxu0 0
    %272 = vmatpush1.bf16.msra.mxu0 0
    %273 = vmatprep.subr.bf16.mxu0 0
    %274 = vmatpush1.bf16.msra.mxu0 0
    %275 = vmatprep.subr.bf16.mxu0 0
    %276 = vmatpush1.bf16.msra.mxu0 0
    %277 = vmatprep.subr.bf16.mxu0 0
    %278 = vmatpush1.bf16.msra.mxu0 0
    %279 = vmatprep.mubr.bf16.mxu0 0
    %280 = vmatmul.mubr.bf16.gmra.mrb[0].mxu0 %v167
    %v281 = vpop.f32.mrb[0].mxu0
    %v282 = vadd.f32 0.0, %v281
    %v283 = vpop.f32.mrb[0].mxu0
    %v284 = vpop.f32.mrb[0].mxu0
    %v285 = vadd.f32 0.0, %v284
    %v286 = vpop.f32.mrb[0].mxu0
    %287 = vmatprep.mubr.bf16.mxu0 0
    %288 = vmatmul.mubr.bf16.gmra.mrb[0].mxu0 %v168
    %v289 = vpop.f32.mrb[0].mxu0
    %v290 = vadd.f32 0.0, %v289
    %v291 = vpop.f32.mrb[0].mxu0
    %v292 = vpop.f32.mrb[0].mxu0
    %v293 = vadd.f32 0.0, %v292
    %v294 = vpop.f32.mrb[0].mxu0
    %295 = vmatprep.mubr.bf16.mxu0 0
    %296 = vmatmul.mubr.bf16.gmra.mrb[0].mxu0 %v169
    %v297 = vpop.f32.mrb[0].mxu0
    %v298 = vadd.f32 0.0, %v297
    %v299 = vpop.f32.mrb[0].mxu0
    %v300 = vpop.f32.mrb[0].mxu0
    %v301 = vadd.f32 0.0, %v300
    %v302 = vpop.f32.mrb[0].mxu0
    %303 = vmatprep.mubr.bf16.mxu0 0
    %304 = vmatmul.mubr.bf16.gmra.mrb[0].mxu0 %v170
    %v305 = vpop.f32.mrb[0].mxu0
    %v306 = vadd.f32 0.0, %v305
    %v307 = vpop.f32.mrb[0].mxu0
    %v308 = vpop.f32.mrb[0].mxu0
    %v309 = vadd.f32 0.0, %v308
    %v310 = vpop.f32.mrb[0].mxu0
    %311 = vmatprep.mubr.bf16.mxu0 0
    %312 = vmatmul.mubr.bf16.gmra.mrb[0].mxu0 %v171
    %v313 = vpop.f32.mrb[0].mxu0
    %v314 = vadd.f32 0.0, %v313
    %v315 = vpop.f32.mrb[0].mxu0
    %v316 = vpop.f32.mrb[0].mxu0
    %v317 = vadd.f32 0.0, %v316
    %v318 = vpop.f32.mrb[0].mxu0
    %319 = vmatprep.mubr.bf16.mxu0 0
    %320 = vmatmul.mubr.bf16.gmra.mrb[0].mxu0 %v172
    %v321 = vpop.f32.mrb[0].mxu0
    %v322 = vadd.f32 0.0, %v321
    %v323 = vpop.f32.mrb[0].mxu0
    %v324 = vpop.f32.mrb[0].mxu0
    %v325 = vadd.f32 0.0, %v324
    %v326 = vpop.f32.mrb[0].mxu0
    %327 = vmatprep.mubr.bf16.mxu0 0
    %328 = vmatmul.mubr.bf16.gmra.mrb[0].mxu0 %v173
    %v329 = vpop.f32.mrb[0].mxu0
    %v330 = vadd.f32 0.0, %v329
    %v331 = vpop.f32.mrb[0].mxu0
    %v332 = vpop.f32.mrb[0].mxu0
    %v333 = vadd.f32 0.0, %v332
    %v334 = vpop.f32.mrb[0].mxu0
    %335 = vmatprep.mubr.bf16.mxu0 0
    %336 = vmatmul.mubr.bf16.gmra.mrb[0].mxu0 %v174
    %v337 = vpop.f32.mrb[0].mxu0
    %v338 = vadd.f32 0.0, %v337
    %v339 = vpop.f32.mrb[0].mxu0
    %v340 = vpop.f32.mrb[0].mxu0
    %v341 = vadd.f32 0.0, %v340
    %v342 = vpop.f32.mrb[0].mxu0
    %343 = vmatprep.mubr.bf16.mxu0 0
    %344 = vmatmul.mubr.bf16.gmra.mrb[0].mxu0 %v175
    %v345 = vpop.f32.mrb[0].mxu0
    %v346 = vadd.f32 0.0, %v345
    %v347 = vpop.f32.mrb[0].mxu0
    %v348 = vpop.f32.mrb[0].mxu0
    %v349 = vadd.f32 0.0, %v348
    %v350 = vpop.f32.mrb[0].mxu0
    %351 = vmatprep.mubr.bf16.mxu0 0
    %352 = vmatmul.mubr.bf16.gmra.mrb[0].mxu0 %v176
    %v353 = vpop.f32.mrb[0].mxu0
    %v354 = vadd.f32 0.0, %v353
    %v355 = vpop.f32.mrb[0].mxu0
    %v356 = vpop.f32.mrb[0].mxu0
    %v357 = vadd.f32 0.0, %v356
    %v358 = vpop.f32.mrb[0].mxu0
    %359 = vmatprep.mubr.bf16.mxu0 0
    %360 = vmatmul.mubr.bf16.gmra.mrb[0].mxu0 %v177
    %v361 = vpop.f32.mrb[0].mxu0
    %v362 = vadd.f32 0.0, %v361
    %v363 = vpop.f32.mrb[0].mxu0
    %v364 = vpop.f32.mrb[0].mxu0
    %v365 = vadd.f32 0.0, %v364
    %v366 = vpop.f32.mrb[0].mxu0
    %367 = vmatprep.mubr.bf16.mxu0 0
    %368 = vmatmul.mubr.bf16.gmra.mrb[0].mxu0 %v178
    %v369 = vpop.f32.mrb[0].mxu0
    %v370 = vadd.f32 0.0, %v369
    %v371 = vpop.f32.mrb[0].mxu0
    %v372 = vpop.f32.mrb[0].mxu0
    %v373 = vadd.f32 0.0, %v372
    %v374 = vpop.f32.mrb[0].mxu0
    %375 = vmatprep.mubr.bf16.mxu0 0
    %376 = vmatmul.mubr.bf16.gmra.mrb[0].mxu0 %v179
    %v377 = vpop.f32.mrb[0].mxu0
    %v378 = vadd.f32 0.0, %v377
    %v379 = vpop.f32.mrb[0].mxu0
    %v380 = vpop.f32.mrb[0].mxu0
    %v381 = vadd.f32 0.0, %v380
    %v382 = vpop.f32.mrb[0].mxu0
    %383 = vmatprep.mubr.bf16.mxu0 0
    %384 = vmatmul.mubr.bf16.gmra.mrb[0].mxu0 %v180
    %v385 = vpop.f32.mrb[0].mxu0
    %v386 = vadd.f32 0.0, %v385
    %v387 = vpop.f32.mrb[0].mxu0
    %v388 = vpop.f32.mrb[0].mxu0
    %v389 = vadd.f32 0.0, %v388
    %v390 = vpop.f32.mrb[0].mxu0
    %391 = vmatprep.mubr.bf16.mxu0 0
    %392 = vmatmul.mubr.bf16.gmra.mrb[0].mxu0 %v181
    %v393 = vpop.f32.mrb[0].mxu0
    %v394 = vadd.f32 0.0, %v393
    %v395 = vpop.f32.mrb[0].mxu0
    %v396 = vpop.f32.mrb[0].mxu0
    %v397 = vadd.f32 0.0, %v396
    %v398 = vpop.f32.mrb[0].mxu0
    %399 = vmatprep.mubr.bf16.mxu0 0
    %400 = vmatmul.mubr.bf16.gmra.mrb[0].mxu0 %v182
    %v401 = vpop.f32.mrb[0].mxu0
    %v402 = vadd.f32 0.0, %v401
    %v403 = vpop.f32.mrb[0].mxu0
    %v404 = vpop.f32.mrb[0].mxu0
    %v405 = vadd.f32 0.0, %v404
    %v406 = vpop.f32.mrb[0].mxu0
    %407 = vdwg.mxu0
    %v408 = vld [vmem:[#allocation2] sm:$0xff]
    %v409 = vld [vmem:[#allocation2 + $0x8] sm:$0xff]
    %v410 = vld [vmem:[#allocation2 + $0x10] sm:$0xff]
    %v411 = vld [vmem:[#allocation2 + $0x18] sm:$0xff]
    %v412 = vld [vmem:[#allocation2 + $0x20] sm:$0xff]
    %v413 = vld [vmem:[#allocation2 + $0x28] sm:$0xff]
    %v414 = vld [vmem:[#allocation2 + $0x30] sm:$0xff]
    %v415 = vld [vmem:[#allocation2 + $0x38] sm:$0xff]
    %v416 = vld [vmem:[#allocation2 + $0x40] sm:$0xff]
    %v417 = vld [vmem:[#allocation2 + $0x48] sm:$0xff]
    %v418 = vld [vmem:[#allocation2 + $0x50] sm:$0xff]
    %v419 = vld [vmem:[#allocation2 + $0x58] sm:$0xff]
    %v420 = vld [vmem:[#allocation2 + $0x60] sm:$0xff]
    %v421 = vld [vmem:[#allocation2 + $0x68] sm:$0xff]
    %v422 = vld [vmem:[#allocation2 + $0x70] sm:$0xff]
    %v423 = vld [vmem:[#allocation2 + $0x78] sm:$0xff]
    %v424 = vld [vmem:[#allocation2 + $0x80] sm:$0xff]
    %v425 = vld [vmem:[#allocation2 + $0x88] sm:$0xff]
    %v426 = vld [vmem:[#allocation2 + $0x90] sm:$0xff]
    %v427 = vld [vmem:[#allocation2 + $0x98] sm:$0xff]
    %v428 = vld [vmem:[#allocation2 + $0xa0] sm:$0xff]
    %v429 = vld [vmem:[#allocation2 + $0xa8] sm:$0xff]
    %v430 = vld [vmem:[#allocation2 + $0xb0] sm:$0xff]
    %v431 = vld [vmem:[#allocation2 + $0xb8] sm:$0xff]
    %v432 = vld [vmem:[#allocation2 + $0xc0] sm:$0xff]
    %v433 = vld [vmem:[#allocation2 + $0xc8] sm:$0xff]
    %v434 = vld [vmem:[#allocation2 + $0xd0] sm:$0xff]
    %v435 = vld [vmem:[#allocation2 + $0xd8] sm:$0xff]
    %v436 = vld [vmem:[#allocation2 + $0xe0] sm:$0xff]
    %v437 = vld [vmem:[#allocation2 + $0xe8] sm:$0xff]
    %v438 = vld [vmem:[#allocation2 + $0xf0] sm:$0xff]
    %v439 = vld [vmem:[#allocation2 + $0xf8] sm:$0xff]
    %v440 = vld [vmem:[%s0] sm:$0xff]
    %v441 = vld [vmem:[%s0 + $0x8] sm:$0xff]
    %v442 = vld [vmem:[%s0 + $0x10] sm:$0xff]
    %v443 = vld [vmem:[%s0 + $0x18] sm:$0xff]
    %v444 = vld [vmem:[%s0 + $0x20] sm:$0xff]
    %v445 = vld [vmem:[%s0 + $0x28] sm:$0xff]
    %v446 = vld [vmem:[%s0 + $0x30] sm:$0xff]
    %v447 = vld [vmem:[%s0 + $0x38] sm:$0xff]
    %v448 = vld [vmem:[%s0 + $0x40] sm:$0xff]
    %v449 = vld [vmem:[%s0 + $0x48] sm:$0xff]
    %v450 = vld [vmem:[%s0 + $0x50] sm:$0xff]
    %v451 = vld [vmem:[%s0 + $0x58] sm:$0xff]
    %v452 = vld [vmem:[%s0 + $0x60] sm:$0xff]
    %v453 = vld [vmem:[%s0 + $0x68] sm:$0xff]
    %v454 = vld [vmem:[%s0 + $0x70] sm:$0xff]
    %v455 = vld [vmem:[%s0 + $0x78] sm:$0xff]
    %v456 = vld [vmem:[%s0 + $0x80] sm:$0xff]
    %v457 = vld [vmem:[%s0 + $0x88] sm:$0xff]
    %v458 = vld [vmem:[%s0 + $0x90] sm:$0xff]
    %v459 = vld [vmem:[%s0 + $0x98] sm:$0xff]
    %v460 = vld [vmem:[%s0 + $0xa0] sm:$0xff]
    %v461 = vld [vmem:[%s0 + $0xa8] sm:$0xff]
    %v462 = vld [vmem:[%s0 + $0xb0] sm:$0xff]
    %v463 = vld [vmem:[%s0 + $0xb8] sm:$0xff]
    %v464 = vld [vmem:[%s0 + $0xc0] sm:$0xff]
    %v465 = vld [vmem:[%s0 + $0xc8] sm:$0xff]
    %v466 = vld [vmem:[%s0 + $0xd0] sm:$0xff]
    %v467 = vld [vmem:[%s0 + $0xd8] sm:$0xff]
    %v468 = vld [vmem:[%s0 + $0xe0] sm:$0xff]
    %v469 = vld [vmem:[%s0 + $0xe8] sm:$0xff]
    %v470 = vld [vmem:[%s0 + $0xf0] sm:$0xff]
    %v471 = vld [vmem:[%s0 + $0xf8] sm:$0xff]
    %v472 = vpack.c.bf16 %v285, %v282
    %v473 = vpack.c.bf16 %v293, %v290
    %v474 = vpack.c.bf16 %v301, %v298
    %v475 = vpack.c.bf16 %v309, %v306
    %v476 = vpack.c.bf16 %v317, %v314
    %v477 = vpack.c.bf16 %v325, %v322
    %v478 = vpack.c.bf16 %v333, %v330
    %v479 = vpack.c.bf16 %v341, %v338
    %v480 = vpack.c.bf16 %v349, %v346
    %v481 = vpack.c.bf16 %v357, %v354
    %v482 = vpack.c.bf16 %v365, %v362
    %v483 = vpack.c.bf16 %v373, %v370
    %v484 = vpack.c.bf16 %v381, %v378
    %v485 = vpack.c.bf16 %v389, %v386
    %v486 = vpack.c.bf16 %v397, %v394
    %v487 = vpack.c.bf16 %v405, %v402
    %v520 = vunpack.c.l.b16 %v440
    %v521 = vunpack.c.h.b16 %v440
    %v522 = vunpack.c.l.b16 %v441
    %v523 = vunpack.c.h.b16 %v441
    %v524 = vunpack.c.l.b16 %v442
    %v525 = vunpack.c.h.b16 %v442
    %v526 = vunpack.c.l.b16 %v443
    %v527 = vunpack.c.h.b16 %v443
    %v528 = vunpack.c.l.b16 %v444
    %v529 = vunpack.c.h.b16 %v444
    %v530 = vunpack.c.l.b16 %v445
    %v531 = vunpack.c.h.b16 %v445
    %v532 = vunpack.c.l.b16 %v446
    %v533 = vunpack.c.h.b16 %v446
    %v534 = vunpack.c.l.b16 %v447
    %v535 = vunpack.c.h.b16 %v447
    %v536 = vunpack.c.l.b16 %v448
    %v537 = vunpack.c.h.b16 %v448
    %v538 = vunpack.c.l.b16 %v449
    %v539 = vunpack.c.h.b16 %v449
    %v540 = vunpack.c.l.b16 %v450
    %v541 = vunpack.c.h.b16 %v450
    %v542 = vunpack.c.l.b16 %v451
    %v543 = vunpack.c.h.b16 %v451
    %v544 = vunpack.c.l.b16 %v452
    %v545 = vunpack.c.h.b16 %v452
    %v546 = vunpack.c.l.b16 %v453
    %v547 = vunpack.c.h.b16 %v453
    %v548 = vunpack.c.l.b16 %v454
    %v549 = vunpack.c.h.b16 %v454
    %v550 = vunpack.c.l.b16 %v455
    %v551 = vunpack.c.h.b16 %v455
    %v552 = vunpack.c.l.b16 %v456
    %v553 = vunpack.c.h.b16 %v456
    %v554 = vunpack.c.l.b16 %v457
    %v555 = vunpack.c.h.b16 %v457
    %v556 = vunpack.c.l.b16 %v458
    %v557 = vunpack.c.h.b16 %v458
    %v558 = vunpack.c.l.b16 %v459
    %v559 = vunpack.c.h.b16 %v459
    %v560 = vunpack.c.l.b16 %v460
    %v561 = vunpack.c.h.b16 %v460
    %v562 = vunpack.c.l.b16 %v461
    %v563 = vunpack.c.h.b16 %v461
    %v564 = vunpack.c.l.b16 %v462
    %v565 = vunpack.c.h.b16 %v462
    %v566 = vunpack.c.l.b16 %v463
    %v567 = vunpack.c.h.b16 %v463
    %v568 = vunpack.c.l.b16 %v464
    %v569 = vunpack.c.h.b16 %v464
    %v570 = vunpack.c.l.b16 %v465
    %v571 = vunpack.c.h.b16 %v465
    %v572 = vunpack.c.l.b16 %v466
    %v573 = vunpack.c.h.b16 %v466
    %v574 = vunpack.c.l.b16 %v467
    %v575 = vunpack.c.h.b16 %v467
    %v576 = vunpack.c.l.b16 %v468
    %v577 = vunpack.c.h.b16 %v468
    %v578 = vunpack.c.l.b16 %v469
    %v579 = vunpack.c.h.b16 %v469
    %v580 = vunpack.c.l.b16 %v470
    %v581 = vunpack.c.h.b16 %v470
    %v582 = vunpack.c.l.b16 %v471
    %v583 = vunpack.c.h.b16 %v471
    %v584 = vpack.c.b16 %v522, %v520
    %v585 = vpack.c.b16 %v523, %v521
    %v586 = vpack.c.b16 %v526, %v524
    %v587 = vpack.c.b16 %v527, %v525
    %v588 = vpack.c.b16 %v530, %v528
    %v589 = vpack.c.b16 %v531, %v529
    %v590 = vpack.c.b16 %v534, %v532
    %v591 = vpack.c.b16 %v535, %v533
    %v592 = vpack.c.b16 %v538, %v536
    %v593 = vpack.c.b16 %v539, %v537
    %v594 = vpack.c.b16 %v542, %v540
    %v595 = vpack.c.b16 %v543, %v541
    %v596 = vpack.c.b16 %v546, %v544
    %v597 = vpack.c.b16 %v547, %v545
    %v598 = vpack.c.b16 %v550, %v548
    %v599 = vpack.c.b16 %v551, %v549
    %v600 = vpack.c.b16 %v554, %v552
    %v601 = vpack.c.b16 %v555, %v553
    %v602 = vpack.c.b16 %v558, %v556
    %v603 = vpack.c.b16 %v559, %v557
    %v604 = vpack.c.b16 %v562, %v560
    %v605 = vpack.c.b16 %v563, %v561
    %v606 = vpack.c.b16 %v566, %v564
    %v607 = vpack.c.b16 %v567, %v565
    %v608 = vpack.c.b16 %v570, %v568
    %v609 = vpack.c.b16 %v571, %v569
    %v610 = vpack.c.b16 %v574, %v572
    %v611 = vpack.c.b16 %v575, %v573
    %v612 = vpack.c.b16 %v578, %v576
    %v613 = vpack.c.b16 %v579, %v577
    %v614 = vpack.c.b16 %v582, %v580
    %v615 = vpack.c.b16 %v583, %v581
    %648 = vmatprep.subr.bf16.mxu0 0
    %649 = vmatpush1.bf16.msra.mxu0 %v472
    %650 = vmatprep.subr.bf16.mxu0 0
    %651 = vmatpush1.bf16.msra.mxu0 %v473
    %652 = vmatprep.subr.bf16.mxu0 0
    %653 = vmatpush1.bf16.msra.mxu0 %v474
    %654 = vmatprep.subr.bf16.mxu0 0
    %655 = vmatpush1.bf16.msra.mxu0 %v475
    %656 = vmatprep.subr.bf16.mxu0 0
    %657 = vmatpush1.bf16.msra.mxu0 %v476
    %658 = vmatprep.subr.bf16.mxu0 0
    %659 = vmatpush1.bf16.msra.mxu0 %v477
    %660 = vmatprep.subr.bf16.mxu0 0
    %661 = vmatpush1.bf16.msra.mxu0 %v478
    %662 = vmatprep.subr.bf16.mxu0 0
    %663 = vmatpush1.bf16.msra.mxu0 %v479
    %664 = vmatprep.subr.bf16.mxu0 0
    %665 = vmatpush1.bf16.msra.mxu0 %v480
    %666 = vmatprep.subr.bf16.mxu0 0
    %667 = vmatpush1.bf16.msra.mxu0 %v481
    %668 = vmatprep.subr.bf16.mxu0 0
    %669 = vmatpush1.bf16.msra.mxu0 %v482
    %670 = vmatprep.subr.bf16.mxu0 0
    %671 = vmatpush1.bf16.msra.mxu0 %v483
    %672 = vmatprep.subr.bf16.mxu0 0
    %673 = vmatpush1.bf16.msra.mxu0 %v484
    %674 = vmatprep.subr.bf16.mxu0 0
    %675 = vmatpush1.bf16.msra.mxu0 %v485
    %676 = vmatprep.subr.bf16.mxu0 0
    %677 = vmatpush1.bf16.msra.mxu0 %v486
    %678 = vmatprep.subr.bf16.mxu0 0
    %679 = vmatpush1.bf16.msra.mxu0 %v487
    %680 = vmatprep.mubr.bf16.mxu0 %v585
    %681 = vmatmul.mubr.bf16.gmra.mrb[0].mxu0 %v584
    %v682 = vpop.f32.mrb[0].mxu0
    %v683 = vadd.f32 0.0, %v682
    %v684 = vpop.f32.mrb[0].mxu0
    %v685 = vpop.f32.mrb[0].mxu0
    %v686 = vadd.f32 0.0, %v685
    %v687 = vpop.f32.mrb[0].mxu0
    %688 = vmatprep.mubr.bf16.mxu0 %v587
    %689 = vmatmul.mubr.bf16.gmra.mrb[0].mxu0 %v586
    %v690 = vpop.f32.mrb[0].mxu0
    %v691 = vadd.f32 0.0, %v690
    %v692 = vpop.f32.mrb[0].mxu0
    %v693 = vpop.f32.mrb[0].mxu0
    %v694 = vadd.f32 0.0, %v693
    %v695 = vpop.f32.mrb[0].mxu0
    %696 = vmatprep.mubr.bf16.mxu0 %v589
    %697 = vmatmul.mubr.bf16.gmra.mrb[0].mxu0 %v588
    %v698 = vpop.f32.mrb[0].mxu0
    %v699 = vadd.f32 0.0, %v698
    %v700 = vpop.f32.mrb[0].mxu0
    %v701 = vpop.f32.mrb[0].mxu0
    %v702 = vadd.f32 0.0, %v701
    %v703 = vpop.f32.mrb[0].mxu0
    %704 = vmatprep.mubr.bf16.mxu0 %v591
    %705 = vmatmul.mubr.bf16.gmra.mrb[0].mxu0 %v590
    %v706 = vpop.f32.mrb[0].mxu0
    %v707 = vadd.f32 0.0, %v706
    %v708 = vpop.f32.mrb[0].mxu0
    %v709 = vpop.f32.mrb[0].mxu0
    %v710 = vadd.f32 0.0, %v709
    %v711 = vpop.f32.mrb[0].mxu0
    %712 = vmatprep.mubr.bf16.mxu0 %v593
    %713 = vmatmul.mubr.bf16.gmra.mrb[0].mxu0 %v592
    %v714 = vpop.f32.mrb[0].mxu0
    %v715 = vadd.f32 0.0, %v714
    %v716 = vpop.f32.mrb[0].mxu0
    %v717 = vpop.f32.mrb[0].mxu0
    %v718 = vadd.f32 0.0, %v717
    %v719 = vpop.f32.mrb[0].mxu0
    %720 = vmatprep.mubr.bf16.mxu0 %v595
    %721 = vmatmul.mubr.bf16.gmra.mrb[0].mxu0 %v594
    %v722 = vpop.f32.mrb[0].mxu0
    %v723 = vadd.f32 0.0, %v722
    %v724 = vpop.f32.mrb[0].mxu0
    %v725 = vpop.f32.mrb[0].mxu0
    %v726 = vadd.f32 0.0, %v725
    %v727 = vpop.f32.mrb[0].mxu0
    %728 = vmatprep.mubr.bf16.mxu0 %v597
    %729 = vmatmul.mubr.bf16.gmra.mrb[0].mxu0 %v596
    %v730 = vpop.f32.mrb[0].mxu0
    %v731 = vadd.f32 0.0, %v730
    %v732 = vpop.f32.mrb[0].mxu0
    %v733 = vpop.f32.mrb[0].mxu0
    %v734 = vadd.f32 0.0, %v733
    %v735 = vpop.f32.mrb[0].mxu0
    %736 = vmatprep.mubr.bf16.mxu0 %v599
    %737 = vmatmul.mubr.bf16.gmra.mrb[0].mxu0 %v598
    %v738 = vpop.f32.mrb[0].mxu0
    %v739 = vadd.f32 0.0, %v738
    %v740 = vpop.f32.mrb[0].mxu0
    %v741 = vpop.f32.mrb[0].mxu0
    %v742 = vadd.f32 0.0, %v741
    %v743 = vpop.f32.mrb[0].mxu0
    %744 = vmatprep.mubr.bf16.mxu0 %v601
    %745 = vmatmul.mubr.bf16.gmra.mrb[0].mxu0 %v600
    %v746 = vpop.f32.mrb[0].mxu0
    %v747 = vadd.f32 0.0, %v746
    %v748 = vpop.f32.mrb[0].mxu0
    %v749 = vpop.f32.mrb[0].mxu0
    %v750 = vadd.f32 0.0, %v749
    %v751 = vpop.f32.mrb[0].mxu0
    %752 = vmatprep.mubr.bf16.mxu0 %v603
    %753 = vmatmul.mubr.bf16.gmra.mrb[0].mxu0 %v602
    %v754 = vpop.f32.mrb[0].mxu0
    %v755 = vadd.f32 0.0, %v754
    %v756 = vpop.f32.mrb[0].mxu0
    %v757 = vpop.f32.mrb[0].mxu0
    %v758 = vadd.f32 0.0, %v757
    %v759 = vpop.f32.mrb[0].mxu0
    %760 = vmatprep.mubr.bf16.mxu0 %v605
    %761 = vmatmul.mubr.bf16.gmra.mrb[0].mxu0 %v604
    %v762 = vpop.f32.mrb[0].mxu0
    %v763 = vadd.f32 0.0, %v762
    %v764 = vpop.f32.mrb[0].mxu0
    %v765 = vpop.f32.mrb[0].mxu0
    %v766 = vadd.f32 0.0, %v765
    %v767 = vpop.f32.mrb[0].mxu0
    %768 = vmatprep.mubr.bf16.mxu0 %v607
    %769 = vmatmul.mubr.bf16.gmra.mrb[0].mxu0 %v606
    %v770 = vpop.f32.mrb[0].mxu0
    %v771 = vadd.f32 0.0, %v770
    %v772 = vpop.f32.mrb[0].mxu0
    %v773 = vpop.f32.mrb[0].mxu0
    %v774 = vadd.f32 0.0, %v773
    %v775 = vpop.f32.mrb[0].mxu0
    %776 = vmatprep.mubr.bf16.mxu0 %v609
    %777 = vmatmul.mubr.bf16.gmra.mrb[0].mxu0 %v608
    %v778 = vpop.f32.mrb[0].mxu0
    %v779 = vadd.f32 0.0, %v778
    %v780 = vpop.f32.mrb[0].mxu0
    %v781 = vpop.f32.mrb[0].mxu0
    %v782 = vadd.f32 0.0, %v781
    %v783 = vpop.f32.mrb[0].mxu0
    %784 = vmatprep.mubr.bf16.mxu0 %v611
    %785 = vmatmul.mubr.bf16.gmra.mrb[0].mxu0 %v610
    %v786 = vpop.f32.mrb[0].mxu0
    %v787 = vadd.f32 0.0, %v786
    %v788 = vpop.f32.mrb[0].mxu0
    %v789 = vpop.f32.mrb[0].mxu0
    %v790 = vadd.f32 0.0, %v789
    %v791 = vpop.f32.mrb[0].mxu0
    %792 = vmatprep.mubr.bf16.mxu0 %v613
    %793 = vmatmul.mubr.bf16.gmra.mrb[0].mxu0 %v612
    %v794 = vpop.f32.mrb[0].mxu0
    %v795 = vadd.f32 0.0, %v794
    %v796 = vpop.f32.mrb[0].mxu0
    %v797 = vpop.f32.mrb[0].mxu0
    %v798 = vadd.f32 0.0, %v797
    %v799 = vpop.f32.mrb[0].mxu0
    %800 = vmatprep.mubr.bf16.mxu0 %v615
    %801 = vmatmul.mubr.bf16.gmra.mrb[0].mxu0 %v614
    %v802 = vpop.f32.mrb[0].mxu0
    %v803 = vadd.f32 0.0, %v802
    %v804 = vpop.f32.mrb[0].mxu0
    %v805 = vpop.f32.mrb[0].mxu0
    %v806 = vadd.f32 0.0, %v805
    %v807 = vpop.f32.mrb[0].mxu0
    %808 = vdwg.mxu0
    %v809 = vadd.f32 %v408, %v683
    %v810 = vadd.f32 %v409, %v686
    %v811 = vadd.f32 %v410, %v691
    %v812 = vadd.f32 %v411, %v694
    %v813 = vadd.f32 %v412, %v699
    %v814 = vadd.f32 %v413, %v702
    %v815 = vadd.f32 %v414, %v707
    %v816 = vadd.f32 %v415, %v710
    %v817 = vadd.f32 %v416, %v715
    %v818 = vadd.f32 %v417, %v718
    %v819 = vadd.f32 %v418, %v723
    %v820 = vadd.f32 %v419, %v726
    %v821 = vadd.f32 %v420, %v731
    %v822 = vadd.f32 %v421, %v734
    %v823 = vadd.f32 %v422, %v739
    %v824 = vadd.f32 %v423, %v742
    %v825 = vadd.f32 %v424, %v747
    %v826 = vadd.f32 %v425, %v750
    %v827 = vadd.f32 %v426, %v755
    %v828 = vadd.f32 %v427, %v758
    %v829 = vadd.f32 %v428, %v763
    %v830 = vadd.f32 %v429, %v766
    %v831 = vadd.f32 %v430, %v771
    %v832 = vadd.f32 %v431, %v774
    %v833 = vadd.f32 %v432, %v779
    %v834 = vadd.f32 %v433, %v782
    %v835 = vadd.f32 %v434, %v787
    %v836 = vadd.f32 %v435, %v790
    %v837 = vadd.f32 %v436, %v795
    %v838 = vadd.f32 %v437, %v798
    %v839 = vadd.f32 %v438, %v803
    %v840 = vadd.f32 %v439, %v806
    %841 = vst [vmem:[#allocation2] sm:$0xff] %v809
    %842 = vst [vmem:[#allocation2 + $0x8] sm:$0xff] %v810
    %843 = vst [vmem:[#allocation2 + $0x10] sm:$0xff] %v811
    %844 = vst [vmem:[#allocation2 + $0x18] sm:$0xff] %v812
    %845 = vst [vmem:[#allocation2 + $0x20] sm:$0xff] %v813
    %846 = vst [vmem:[#allocation2 + $0x28] sm:$0xff] %v814
    %847 = vst [vmem:[#allocation2 + $0x30] sm:$0xff] %v815
    %848 = vst [vmem:[#allocation2 + $0x38] sm:$0xff] %v816
    %849 = vst [vmem:[#allocation2 + $0x40] sm:$0xff] %v817
    %850 = vst [vmem:[#allocation2 + $0x48] sm:$0xff] %v818
    %851 = vst [vmem:[#allocation2 + $0x50] sm:$0xff] %v819
    %852 = vst [vmem:[#allocation2 + $0x58] sm:$0xff] %v820
    %853 = vst [vmem:[#allocation2 + $0x60] sm:$0xff] %v821
    %854 = vst [vmem:[#allocation2 + $0x68] sm:$0xff] %v822
    %855 = vst [vmem:[#allocation2 + $0x70] sm:$0xff] %v823
    %856 = vst [vmem:[#allocation2 + $0x78] sm:$0xff] %v824
    %857 = vst [vmem:[#allocation2 + $0x80] sm:$0xff] %v825
    %858 = vst [vmem:[#allocation2 + $0x88] sm:$0xff] %v826
    %859 = vst [vmem:[#allocation2 + $0x90] sm:$0xff] %v827
    %860 = vst [vmem:[#allocation2 + $0x98] sm:$0xff] %v828
    %861 = vst [vmem:[#allocation2 + $0xa0] sm:$0xff] %v829
    %862 = vst [vmem:[#allocation2 + $0xa8] sm:$0xff] %v830
    %863 = vst [vmem:[#allocation2 + $0xb0] sm:$0xff] %v831
    %864 = vst [vmem:[#allocation2 + $0xb8] sm:$0xff] %v832
    %865 = vst [vmem:[#allocation2 + $0xc0] sm:$0xff] %v833
    %866 = vst [vmem:[#allocation2 + $0xc8] sm:$0xff] %v834
    %867 = vst [vmem:[#allocation2 + $0xd0] sm:$0xff] %v835
    %868 = vst [vmem:[#allocation2 + $0xd8] sm:$0xff] %v836
    %869 = vst [vmem:[#allocation2 + $0xe0] sm:$0xff] %v837
    %870 = vst [vmem:[#allocation2 + $0xe8] sm:$0xff] %v838
    %871 = vst [vmem:[#allocation2 + $0xf0] sm:$0xff] %v839
    %872 = vst [vmem:[#allocation2 + $0xf8] sm:$0xff] %v840
    // Predicated region
    $region22: #{graph_convolution.1} parent=1 // pred_check
      %p873 = pneg %p19
    $region23: #{graph_convolution.1} parent=1 // pred_check_branch
      %875 = sbr.rel (%p873) target = $region25
    $region24: #{graph_convolution.1} parent=1 // pred_region
      %v876 = vld [vmem:[#allocation2] sm:$0xff]
      %v877 = vld [vmem:[#allocation2 + $0x8] sm:$0xff]
      %v878 = vld [vmem:[#allocation2 + $0x10] sm:$0xff]
      %v879 = vld [vmem:[#allocation2 + $0x18] sm:$0xff]
      %v880 = vld [vmem:[#allocation2 + $0x20] sm:$0xff]
      %v881 = vld [vmem:[#allocation2 + $0x28] sm:$0xff]
      %v882 = vld [vmem:[#allocation2 + $0x30] sm:$0xff]
      %v883 = vld [vmem:[#allocation2 + $0x38] sm:$0xff]
      %v884 = vld [vmem:[#allocation2 + $0x40] sm:$0xff]
      %v885 = vld [vmem:[#allocation2 + $0x48] sm:$0xff]
      %v886 = vld [vmem:[#allocation2 + $0x50] sm:$0xff]
      %v887 = vld [vmem:[#allocation2 + $0x58] sm:$0xff]
      %v888 = vld [vmem:[#allocation2 + $0x60] sm:$0xff]
      %v889 = vld [vmem:[#allocation2 + $0x68] sm:$0xff]
      %v890 = vld [vmem:[#allocation2 + $0x70] sm:$0xff]
      %v891 = vld [vmem:[#allocation2 + $0x78] sm:$0xff]
      %v892 = vld [vmem:[#allocation2 + $0x80] sm:$0xff]
      %v893 = vld [vmem:[#allocation2 + $0x88] sm:$0xff]
      %v894 = vld [vmem:[#allocation2 + $0x90] sm:$0xff]
      %v895 = vld [vmem:[#allocation2 + $0x98] sm:$0xff]
      %v896 = vld [vmem:[#allocation2 + $0xa0] sm:$0xff]
      %v897 = vld [vmem:[#allocation2 + $0xa8] sm:$0xff]
      %v898 = vld [vmem:[#allocation2 + $0xb0] sm:$0xff]
      %v899 = vld [vmem:[#allocation2 + $0xb8] sm:$0xff]
      %v900 = vld [vmem:[#allocation2 + $0xc0] sm:$0xff]
      %v901 = vld [vmem:[#allocation2 + $0xc8] sm:$0xff]
      %v902 = vld [vmem:[#allocation2 + $0xd0] sm:$0xff]
      %v903 = vld [vmem:[#allocation2 + $0xd8] sm:$0xff]
      %v904 = vld [vmem:[#allocation2 + $0xe0] sm:$0xff]
      %v905 = vld [vmem:[#allocation2 + $0xe8] sm:$0xff]
      %v906 = vld [vmem:[#allocation2 + $0xf0] sm:$0xff]
      %v907 = vld [vmem:[#allocation2 + $0xf8] sm:$0xff]
      %v908 = vld [vmem:[%s3] sm:$0x1]
      %v910 = vlaneseq
      %v911 = vshrl.u32 %v910, 7
      %v912 = vsub.s32 0, %v911
      %v913 = vrot.slane %v908, %v912
      %v915 = vadd.f32 %v876, %v913
      %v916 = vadd.f32 %v877, %v913
      %v917 = vadd.f32 %v878, %v913
      %v918 = vadd.f32 %v879, %v913
      %v919 = vadd.f32 %v880, %v913
      %v920 = vadd.f32 %v881, %v913
      %v921 = vadd.f32 %v882, %v913
      %v922 = vadd.f32 %v883, %v913
      %v923 = vadd.f32 %v884, %v913
      %v924 = vadd.f32 %v885, %v913
      %v925 = vadd.f32 %v886, %v913
      %v926 = vadd.f32 %v887, %v913
      %v927 = vadd.f32 %v888, %v913
      %v928 = vadd.f32 %v889, %v913
      %v929 = vadd.f32 %v890, %v913
      %v930 = vadd.f32 %v891, %v913
      %v931 = vadd.f32 %v892, %v913
      %v932 = vadd.f32 %v893, %v913
      %v933 = vadd.f32 %v894, %v913
      %v934 = vadd.f32 %v895, %v913
      %v935 = vadd.f32 %v896, %v913
      %v936 = vadd.f32 %v897, %v913
      %v937 = vadd.f32 %v898, %v913
      %v938 = vadd.f32 %v899, %v913
      %v939 = vadd.f32 %v900, %v913
      %v940 = vadd.f32 %v901, %v913
      %v941 = vadd.f32 %v902, %v913
      %v942 = vadd.f32 %v903, %v913
      %v943 = vadd.f32 %v904, %v913
      %v944 = vadd.f32 %v905, %v913
      %v945 = vadd.f32 %v906, %v913
      %v946 = vadd.f32 %v907, %v913
      %947 = vst [vmem:[#allocation2] sm:$0xff] %v915
      %948 = vst [vmem:[#allocation2 + $0x8] sm:$0xff] %v916
      %949 = vst [vmem:[#allocation2 + $0x10] sm:$0xff] %v917
      %950 = vst [vmem:[#allocation2 + $0x18] sm:$0xff] %v918
      %951 = vst [vmem:[#allocation2 + $0x20] sm:$0xff] %v919
      %952 = vst [vmem:[#allocation2 + $0x28] sm:$0xff] %v920
      %953 = vst [vmem:[#allocation2 + $0x30] sm:$0xff] %v921
      %954 = vst [vmem:[#allocation2 + $0x38] sm:$0xff] %v922
      %955 = vst [vmem:[#allocation2 + $0x40] sm:$0xff] %v923
      %956 = vst [vmem:[#allocation2 + $0x48] sm:$0xff] %v924
      %957 = vst [vmem:[#allocation2 + $0x50] sm:$0xff] %v925
      %958 = vst [vmem:[#allocation2 + $0x58] sm:$0xff] %v926
      %959 = vst [vmem:[#allocation2 + $0x60] sm:$0xff] %v927
      %960 = vst [vmem:[#allocation2 + $0x68] sm:$0xff] %v928
      %961 = vst [vmem:[#allocation2 + $0x70] sm:$0xff] %v929
      %962 = vst [vmem:[#allocation2 + $0x78] sm:$0xff] %v930
      %963 = vst [vmem:[#allocation2 + $0x80] sm:$0xff] %v931
      %964 = vst [vmem:[#allocation2 + $0x88] sm:$0xff] %v932
      %965 = vst [vmem:[#allocation2 + $0x90] sm:$0xff] %v933
      %966 = vst [vmem:[#allocation2 + $0x98] sm:$0xff] %v934
      %967 = vst [vmem:[#allocation2 + $0xa0] sm:$0xff] %v935
      %968 = vst [vmem:[#allocation2 + $0xa8] sm:$0xff] %v936
      %969 = vst [vmem:[#allocation2 + $0xb0] sm:$0xff] %v937
      %970 = vst [vmem:[#allocation2 + $0xb8] sm:$0xff] %v938
      %971 = vst [vmem:[#allocation2 + $0xc0] sm:$0xff] %v939
      %972 = vst [vmem:[#allocation2 + $0xc8] sm:$0xff] %v940
      %973 = vst [vmem:[#allocation2 + $0xd0] sm:$0xff] %v941
      %974 = vst [vmem:[#allocation2 + $0xd8] sm:$0xff] %v942
      %975 = vst [vmem:[#allocation2 + $0xe0] sm:$0xff] %v943
      %976 = vst [vmem:[#allocation2 + $0xe8] sm:$0xff] %v944
      %977 = vst [vmem:[#allocation2 + $0xf0] sm:$0xff] %v945
      %978 = vst [vmem:[#allocation2 + $0xf8] sm:$0xff] %v946
    $region25: #{graph_convolution.1} parent=1 // pred_fallthru
      _
    // Predicated region
    $region26: #{graph_convolution.1} parent=1 // pred_check
      _
    $region27: #{graph_convolution.1} parent=1 // pred_check_branch
      %980 = sbr.rel (0) target = $region29
    $region28: #{graph_convolution.1} parent=1 // pred_region
      %s982 = ssub.s32 4096, 4096
      %983 = vsyncadd [#allocation3], %s982
      %s984 = sshll.u32 [#allocation2], 4
      %s985 = int_to_ptr.vmem [resolvable:$true] %s984
      %990 = dma.vmem_to_hbm [thread:$0]  %s985, 4096, %s4, [#allocation3], 128, 128, 8
    $region29: #{graph_convolution.1} parent=1 // pred_fallthru
      _
    // Predicated region
    $region30: #{graph_convolution.1} parent=1 // pred_check
      _
    $region31: #{graph_convolution.1} parent=1 // pred_check_branch
      %992 = sbr.rel (0) target = $region33
    $region32: #{graph_convolution.1} parent=1 // pred_region
      %993 = dma.done [#allocation3], 4096
    $region33: #{graph_convolution.1} parent=1 // pred_fallthru
      _
    %994 = vsyncpa [#allocation3], 1

</llo_original>
